<compile_context>
chip_gen: v5e
topology: v5e:2x2
jax: 0.10.0
libtpu: 0.0.40
codegen_flags: <defaults>
</compile_context>

<pallas_src>
import math

import jax
import jax.numpy as jnp
from jax.experimental import pallas as pl
from jax.experimental.pallas import tpu as pltpu


CONFIG = dict(
    in_dim=16,
    injection_dim=4,
    embedding_dim=32,
    hidden1_dim=64,
    hidden2_dim=32,
    encoder_dim=8,
    out_dim=16,
)

TILE_M_MAX = 1024   # sweep 512-2048; mem/overhead-bound kernel likes big tiles


def _round_up(x, m):
    return ((x + m - 1) // m) * m


def _pick_tile_m(n, tile_m_max=TILE_M_MAX):
    """Batch tile: big (amortize per-step overhead) but >=2 grid steps when
    possible so a v7x megacore can split the batch across both TensorCores."""
    if n <= 8:
        return n                                   # single block == full dim
    if n <= 2 * tile_m_max:
        return min(tile_m_max, _round_up((n + 1) // 2, 8))
    return tile_m_max


def _mlp_kernel(x_ref, inj_ref,
                w0h, w0i, b0, w1h, w1i, b1, w2h, w2i, b2, w3h, w3i, b3,
                w4, b4, w5, b5, w6, b6,
                out_ref):
    """One batch tile through embedding -> encode1..3 (with injection) -> decode."""
    x = x_ref[...]          # (tile_m, in_dim)  f32, straight from HBM
    inj = inj_ref[...]      # (tile_m, inj_dim) f32

    def dot(a, w_ref):
        # Cast the operand to the weight compute dtype right at the MXU;
        # accumulate in f32 regardless of operand dtype.
        return jnp.dot(a.astype(w_ref.dtype), w_ref[...],
                       preferred_element_type=jnp.float32)

    # embedding: Linear(cat(x, inj))  — no activation
    h = dot(x, w0h) + dot(inj, w0i) + b0[...]
    # encode1..3: Linear(cat(h, inj)) then ReLU
    h = jnp.maximum(dot(h, w1h) + dot(inj, w1i) + b1[...], 0.0)
    h = jnp.maximum(dot(h, w2h) + dot(inj, w2i) + b2[...], 0.0)
    h = jnp.maximum(dot(h, w3h) + dot(inj, w3i) + b3[...], 0.0)
    # decode: Linear, ReLU, Linear, ReLU, Linear (no padding on the last layer)
    h = jnp.maximum(dot(h, w4) + b4[...], 0.0)
    h = jnp.maximum(dot(h, w5) + b5[...], 0.0)
    h = dot(h, w6) + b6[...]
    out_ref[...] = h.astype(out_ref.dtype)          # (tile_m, out_dim) store


def init_params(key, config):
    """PyTorch-style Linear init; weights stored pre-transposed as (in, out)."""
    inj = config['injection_dim']
    dims = [
        (config['in_dim'] + inj, config['embedding_dim']),        # embedding
        (config['embedding_dim'] + inj, config['hidden1_dim']),   # encode1
        (config['hidden1_dim'] + inj, config['hidden2_dim']),     # encode2
        (config['hidden2_dim'] + inj, config['encoder_dim']),     # encode3
        (config['encoder_dim'], config['hidden2_dim']),           # decode 1
        (config['hidden2_dim'], config['hidden1_dim']),           # decode 2
        (config['hidden1_dim'], config['out_dim']),               # decode 3
    ]
    params = []
    for (fi, fo) in dims:
        key, kw, kb = jax.random.split(key, 3)
        bound = 1.0 / math.sqrt(fi)
        w = jax.random.uniform(kw, (fi, fo), jnp.float32, minval=-bound, maxval=bound)
        b = jax.random.uniform(kb, (1, fo), jnp.float32, minval=-bound, maxval=bound)
        params.append((w, b))
    return params


def auto_encoder_injection_forward(data_in, g0_inject, params, config,
                                   *, tile_m=None,
                                   compute_dtype=jnp.bfloat16):
    n, in_dim = data_in.shape
    inj_dim = g0_inject.shape[1]
    out_dim = config['out_dim']
    if tile_m is None:
        tile_m = _pick_tile_m(n)

    cdt = compute_dtype

    # ---- flatten params; split injection-concat layers ----
    flat_params = []
    param_specs = []

    def add_param(arr):
        flat_params.append(arr)
        # Small resident operands: full block, constant index -> DMA'd once.
        param_specs.append(pl.BlockSpec(arr.shape, lambda i: (0, 0)))

    main_dims = [in_dim, config['embedding_dim'],
                 config['hidden1_dim'], config['hidden2_dim']]
    for li in range(4):                       # embedding + encode1..3
        w, b = params[li]
        add_param(w[:main_dims[li], :].astype(cdt))    # rows for the activation
        add_param(w[main_dims[li]:, :].astype(cdt))    # rows for g0_inject
        add_param(b.astype(jnp.float32))
    for li in range(4, 7):                    # decode layers 1-3 (unpadded)
        w, b = params[li]
        add_param(w.astype(cdt))
        add_param(b.astype(jnp.float32))

    grid = (pl.cdiv(n, tile_m),)

    layer_dims = [(in_dim + inj_dim, config['embedding_dim']),
                  (config['embedding_dim'] + inj_dim, config['hidden1_dim']),
                  (config['hidden1_dim'] + inj_dim, config['hidden2_dim']),
                  (config['hidden2_dim'] + inj_dim, config['encoder_dim']),
                  (config['encoder_dim'], config['hidden2_dim']),
                  (config['hidden2_dim'], config['hidden1_dim']),
                  (config['hidden1_dim'], out_dim)]
    flops = 2 * n * sum(fi * fo for fi, fo in layer_dims)
    bytes_accessed = (data_in.size * data_in.dtype.itemsize
                      + g0_inject.size * g0_inject.dtype.itemsize
                      + sum(int(p.size) * p.dtype.itemsize for p in flat_params)
                      + n * out_dim * 4)

    out = pl.pallas_call(
        _mlp_kernel,
        out_shape=jax.ShapeDtypeStruct((n, out_dim), data_in.dtype),
        grid=grid,
        in_specs=[pl.BlockSpec((tile_m, in_dim), lambda i: (i, 0)),
                  pl.BlockSpec((tile_m, inj_dim), lambda i: (i, 0))] + param_specs,
        out_specs=pl.BlockSpec((tile_m, out_dim), lambda i: (i, 0)),
        compiler_params=pltpu.CompilerParams(dimension_semantics=("parallel",)),
        cost_estimate=pl.CostEstimate(flops=int(flops), transcendentals=0,
                                      bytes_accessed=int(bytes_accessed)),
    )(data_in, g0_inject, *flat_params)
    return out


def reference_forward(data_in, g0_inject, params):
    """Pure-JAX f32 reference mirroring the PyTorch module exactly."""
    P = jax.lax.Precision.HIGHEST

    def lin(x, w, b):
        return jnp.dot(x, w, precision=P) + b

    x = jnp.concatenate([data_in, g0_inject], axis=1)
    x = lin(x, *params[0])                          # embedding (no activation)
    for (w, b) in params[1:4]:                      # encode1..3: Linear, ReLU
        x = jnp.concatenate([x, g0_inject], axis=1)
        x = jnp.maximum(lin(x, w, b), 0.0)
    for (w, b) in params[4:6]:                      # decode: Linear, ReLU (x2)
        x = jnp.maximum(lin(x, w, b), 0.0)
    w, b = params[6]
    return lin(x, w, b)                             # final Linear, no activation


if __name__ == "__main__":
    key = jax.random.PRNGKey(0)
    k_data, k_inj = jax.random.split(key)

    batch = 16
    data_in = jax.random.normal(k_data, (batch, CONFIG['in_dim']), jnp.float32)
    g0_inject = jax.random.normal(k_inj, (batch, CONFIG['injection_dim']), jnp.float32)

    params = init_params(jax.random.PRNGKey(42), CONFIG)
    ref = reference_forward(data_in, g0_inject, params)

    # f32 MXU operands: tight check against the pure-JAX reference.
    out_f32 = auto_encoder_injection_forward(data_in, g0_inject, params, CONFIG,
                                              compute_dtype=jnp.float32)
    out_f32 = jax.block_until_ready(out_f32)
    assert out_f32.shape == (batch, CONFIG['out_dim'])
    assert jnp.allclose(out_f32, ref, atol=1e-2, rtol=1e-2), "f32 mismatch vs reference"

    # Default bf16 MXU operands (recommended path on v5e/v6e/v7x): loose check.
    out_bf16 = auto_encoder_injection_forward(data_in, g0_inject, params, CONFIG)
    out_bf16 = jax.block_until_ready(out_bf16)
    assert out_bf16.shape == (batch, CONFIG['out_dim'])
    assert bool(jnp.all(jnp.isfinite(out_bf16)))
    assert jnp.allclose(out_bf16, ref, atol=5e-2, rtol=5e-2), "bf16 far from reference"

    print("KERNEL_OK")
</pallas_src>

<mosaic_0001>
module attributes {stable_mosaic.version = 11 : i64} {
  func.func @_mlp_kernel(%arg0: i32, %arg1: memref<8x16xf32, #tpu.memory_space<vmem>>, %arg2: memref<8x4xf32, #tpu.memory_space<vmem>>, %arg3: memref<16x32xf32, #tpu.memory_space<vmem>>, %arg4: memref<4x32xf32, #tpu.memory_space<vmem>>, %arg5: memref<1x32xf32, #tpu.memory_space<vmem>>, %arg6: memref<32x64xf32, #tpu.memory_space<vmem>>, %arg7: memref<4x64xf32, #tpu.memory_space<vmem>>, %arg8: memref<1x64xf32, #tpu.memory_space<vmem>>, %arg9: memref<64x32xf32, #tpu.memory_space<vmem>>, %arg10: memref<4x32xf32, #tpu.memory_space<vmem>>, %arg11: memref<1x32xf32, #tpu.memory_space<vmem>>, %arg12: memref<32x8xf32, #tpu.memory_space<vmem>>, %arg13: memref<4x8xf32, #tpu.memory_space<vmem>>, %arg14: memref<1x8xf32, #tpu.memory_space<vmem>>, %arg15: memref<8x32xf32, #tpu.memory_space<vmem>>, %arg16: memref<1x32xf32, #tpu.memory_space<vmem>>, %arg17: memref<32x64xf32, #tpu.memory_space<vmem>>, %arg18: memref<1x64xf32, #tpu.memory_space<vmem>>, %arg19: memref<64x16xf32, #tpu.memory_space<vmem>>, %arg20: memref<1x16xf32, #tpu.memory_space<vmem>>, %arg21: memref<8x16xf32, #tpu.memory_space<vmem>>) attributes {dimension_semantics = [#tpu.dimension_semantics<parallel>], iteration_bounds = array<i64: 2>, scalar_prefetch = 0 : i64, scratch_operands = 0 : i64, tpu.core_type = #tpu.core_type<tc>, window_params = [{transform_indices = @transform_0, window_bounds = array<i64: 8, 16>}, {transform_indices = @transform_1, window_bounds = array<i64: 8, 4>}, {pipeline_mode = #tpu.pipeline_mode<synchronous>, transform_indices = @transform_2, window_bounds = array<i64: 16, 32>}, {pipeline_mode = #tpu.pipeline_mode<synchronous>, transform_indices = @transform_3, window_bounds = array<i64: 4, 32>}, {pipeline_mode = #tpu.pipeline_mode<synchronous>, transform_indices = @transform_4, window_bounds = array<i64: 1, 32>}, {pipeline_mode = #tpu.pipeline_mode<synchronous>, transform_indices = @transform_5, window_bounds = array<i64: 32, 64>}, {pipeline_mode = #tpu.pipeline_mode<synchronous>, transform_indices = @transform_6, window_bounds = array<i64: 4, 64>}, {pipeline_mode = #tpu.pipeline_mode<synchronous>, transform_indices = @transform_7, window_bounds = array<i64: 1, 64>}, {pipeline_mode = #tpu.pipeline_mode<synchronous>, transform_indices = @transform_8, window_bounds = array<i64: 64, 32>}, {pipeline_mode = #tpu.pipeline_mode<synchronous>, transform_indices = @transform_9, window_bounds = array<i64: 4, 32>}, {pipeline_mode = #tpu.pipeline_mode<synchronous>, transform_indices = @transform_10, window_bounds = array<i64: 1, 32>}, {pipeline_mode = #tpu.pipeline_mode<synchronous>, transform_indices = @transform_11, window_bounds = array<i64: 32, 8>}, {pipeline_mode = #tpu.pipeline_mode<synchronous>, transform_indices = @transform_12, window_bounds = array<i64: 4, 8>}, {pipeline_mode = #tpu.pipeline_mode<synchronous>, transform_indices = @transform_13, window_bounds = array<i64: 1, 8>}, {pipeline_mode = #tpu.pipeline_mode<synchronous>, transform_indices = @transform_14, window_bounds = array<i64: 8, 32>}, {pipeline_mode = #tpu.pipeline_mode<synchronous>, transform_indices = @transform_15, window_bounds = array<i64: 1, 32>}, {pipeline_mode = #tpu.pipeline_mode<synchronous>, transform_indices = @transform_16, window_bounds = array<i64: 32, 64>}, {pipeline_mode = #tpu.pipeline_mode<synchronous>, transform_indices = @transform_17, window_bounds = array<i64: 1, 64>}, {pipeline_mode = #tpu.pipeline_mode<synchronous>, transform_indices = @transform_18, window_bounds = array<i64: 64, 16>}, {pipeline_mode = #tpu.pipeline_mode<synchronous>, transform_indices = @transform_19, window_bounds = array<i64: 1, 16>}, {transform_indices = @transform_20, window_bounds = array<i64: 8, 16>}]} {
    %c0 = arith.constant 0 : index
    %c0_0 = arith.constant 0 : index
    %0 = vector.load %arg1[%c0, %c0_0] : memref<8x16xf32, #tpu.memory_space<vmem>>, vector<8x16xf32>
    %c0_1 = arith.constant 0 : index
    %c0_2 = arith.constant 0 : index
    %1 = vector.load %arg2[%c0_1, %c0_2] : memref<8x4xf32, #tpu.memory_space<vmem>>, vector<8x4xf32>
    %c0_3 = arith.constant 0 : index
    %c0_4 = arith.constant 0 : index
    %2 = vector.load %arg3[%c0_3, %c0_4] : memref<16x32xf32, #tpu.memory_space<vmem>>, vector<16x32xf32>
    %cst = arith.constant dense<0.000000e+00> : vector<8x32xf32>
    %3 = tpu.matmul %0, %2, %cst {dimension_numbers = #tpu.dot_dimension_numbers<[1], [0], [0], [1], [0, 0, 1, 1], [], []>} : vector<8x16xf32>, vector<16x32xf32>, vector<8x32xf32> -> vector<8x32xf32>
    %c0_5 = arith.constant 0 : index
    %c0_6 = arith.constant 0 : index
    %4 = vector.load %arg4[%c0_5, %c0_6] : memref<4x32xf32, #tpu.memory_space<vmem>>, vector<4x32xf32>
    %cst_7 = arith.constant dense<0.000000e+00> : vector<8x32xf32>
    %5 = tpu.matmul %1, %4, %cst_7 {dimension_numbers = #tpu.dot_dimension_numbers<[1], [0], [0], [1], [0, 0, 1, 1], [], []>} : vector<8x4xf32>, vector<4x32xf32>, vector<8x32xf32> -> vector<8x32xf32>
    %6 = arith.addf %3, %5 : vector<8x32xf32>
    %c0_8 = arith.constant 0 : index
    %c0_9 = arith.constant 0 : index
    %7 = vector.load %arg5[%c0_8, %c0_9] : memref<1x32xf32, #tpu.memory_space<vmem>>, vector<1x32xf32>
    %8 = vector.broadcast %7 : vector<1x32xf32> to vector<8x32xf32>
    %9 = arith.addf %6, %8 : vector<8x32xf32>
    %c0_10 = arith.constant 0 : index
    %c0_11 = arith.constant 0 : index
    %10 = vector.load %arg6[%c0_10, %c0_11] : memref<32x64xf32, #tpu.memory_space<vmem>>, vector<32x64xf32>
    %cst_12 = arith.constant dense<0.000000e+00> : vector<8x64xf32>
    %11 = tpu.matmul %9, %10, %cst_12 {dimension_numbers = #tpu.dot_dimension_numbers<[1], [0], [0], [1], [0, 0, 1, 1], [], []>} : vector<8x32xf32>, vector<32x64xf32>, vector<8x64xf32> -> vector<8x64xf32>
    %c0_13 = arith.constant 0 : index
    %c0_14 = arith.constant 0 : index
    %12 = vector.load %arg7[%c0_13, %c0_14] : memref<4x64xf32, #tpu.memory_space<vmem>>, vector<4x64xf32>
    %cst_15 = arith.constant dense<0.000000e+00> : vector<8x64xf32>
    %13 = tpu.matmul %1, %12, %cst_15 {dimension_numbers = #tpu.dot_dimension_numbers<[1], [0], [0], [1], [0, 0, 1, 1], [], []>} : vector<8x4xf32>, vector<4x64xf32>, vector<8x64xf32> -> vector<8x64xf32>
    %14 = arith.addf %11, %13 : vector<8x64xf32>
    %c0_16 = arith.constant 0 : index
    %c0_17 = arith.constant 0 : index
    %15 = vector.load %arg8[%c0_16, %c0_17] : memref<1x64xf32, #tpu.memory_space<vmem>>, vector<1x64xf32>
    %16 = vector.broadcast %15 : vector<1x64xf32> to vector<8x64xf32>
    %17 = arith.addf %14, %16 : vector<8x64xf32>
    %cst_18 = arith.constant 0.000000e+00 : f32
    %18 = vector.broadcast %cst_18 : f32 to vector<8x64xf32>
    %19 = arith.maximumf %17, %18 : vector<8x64xf32>
    %c0_19 = arith.constant 0 : index
    %c0_20 = arith.constant 0 : index
    %20 = vector.load %arg9[%c0_19, %c0_20] : memref<64x32xf32, #tpu.memory_space<vmem>>, vector<64x32xf32>
    %cst_21 = arith.constant dense<0.000000e+00> : vector<8x32xf32>
    %21 = tpu.matmul %19, %20, %cst_21 {dimension_numbers = #tpu.dot_dimension_numbers<[1], [0], [0], [1], [0, 0, 1, 1], [], []>} : vector<8x64xf32>, vector<64x32xf32>, vector<8x32xf32> -> vector<8x32xf32>
    %c0_22 = arith.constant 0 : index
    %c0_23 = arith.constant 0 : index
    %22 = vector.load %arg10[%c0_22, %c0_23] : memref<4x32xf32, #tpu.memory_space<vmem>>, vector<4x32xf32>
    %cst_24 = arith.constant dense<0.000000e+00> : vector<8x32xf32>
    %23 = tpu.matmul %1, %22, %cst_24 {dimension_numbers = #tpu.dot_dimension_numbers<[1], [0], [0], [1], [0, 0, 1, 1], [], []>} : vector<8x4xf32>, vector<4x32xf32>, vector<8x32xf32> -> vector<8x32xf32>
    %24 = arith.addf %21, %23 : vector<8x32xf32>
    %c0_25 = arith.constant 0 : index
    %c0_26 = arith.constant 0 : index
    %25 = vector.load %arg11[%c0_25, %c0_26] : memref<1x32xf32, #tpu.memory_space<vmem>>, vector<1x32xf32>
    %26 = vector.broadcast %25 : vector<1x32xf32> to vector<8x32xf32>
    %27 = arith.addf %24, %26 : vector<8x32xf32>
    %cst_27 = arith.constant 0.000000e+00 : f32
    %28 = vector.broadcast %cst_27 : f32 to vector<8x32xf32>
    %29 = arith.maximumf %27, %28 : vector<8x32xf32>
    %c0_28 = arith.constant 0 : index
    %c0_29 = arith.constant 0 : index
    %30 = vector.load %arg12[%c0_28, %c0_29] : memref<32x8xf32, #tpu.memory_space<vmem>>, vector<32x8xf32>
    %cst_30 = arith.constant dense<0.000000e+00> : vector<8x8xf32>
    %31 = tpu.matmul %29, %30, %cst_30 {dimension_numbers = #tpu.dot_dimension_numbers<[1], [0], [0], [1], [0, 0, 1, 1], [], []>} : vector<8x32xf32>, vector<32x8xf32>, vector<8x8xf32> -> vector<8x8xf32>
    %c0_31 = arith.constant 0 : index
    %c0_32 = arith.constant 0 : index
    %32 = vector.load %arg13[%c0_31, %c0_32] : memref<4x8xf32, #tpu.memory_space<vmem>>, vector<4x8xf32>
    %cst_33 = arith.constant dense<0.000000e+00> : vector<8x8xf32>
    %33 = tpu.matmul %1, %32, %cst_33 {dimension_numbers = #tpu.dot_dimension_numbers<[1], [0], [0], [1], [0, 0, 1, 1], [], []>} : vector<8x4xf32>, vector<4x8xf32>, vector<8x8xf32> -> vector<8x8xf32>
    %34 = arith.addf %31, %33 : vector<8x8xf32>
    %c0_34 = arith.constant 0 : index
    %c0_35 = arith.constant 0 : index
    %35 = vector.load %arg14[%c0_34, %c0_35] : memref<1x8xf32, #tpu.memory_space<vmem>>, vector<1x8xf32>
    %36 = vector.broadcast %35 : vector<1x8xf32> to vector<8x8xf32>
    %37 = arith.addf %34, %36 : vector<8x8xf32>
    %cst_36 = arith.constant 0.000000e+00 : f32
    %38 = vector.broadcast %cst_36 : f32 to vector<8x8xf32>
    %39 = arith.maximumf %37, %38 : vector<8x8xf32>
    %c0_37 = arith.constant 0 : index
    %c0_38 = arith.constant 0 : index
    %40 = vector.load %arg15[%c0_37, %c0_38] : memref<8x32xf32, #tpu.memory_space<vmem>>, vector<8x32xf32>
    %cst_39 = arith.constant dense<0.000000e+00> : vector<8x32xf32>
    %41 = tpu.matmul %39, %40, %cst_39 {dimension_numbers = #tpu.dot_dimension_numbers<[1], [0], [0], [1], [0, 0, 1, 1], [], []>} : vector<8x8xf32>, vector<8x32xf32>, vector<8x32xf32> -> vector<8x32xf32>
    %c0_40 = arith.constant 0 : index
    %c0_41 = arith.constant 0 : index
    %42 = vector.load %arg16[%c0_40, %c0_41] : memref<1x32xf32, #tpu.memory_space<vmem>>, vector<1x32xf32>
    %43 = vector.broadcast %42 : vector<1x32xf32> to vector<8x32xf32>
    %44 = arith.addf %41, %43 : vector<8x32xf32>
    %cst_42 = arith.constant 0.000000e+00 : f32
    %45 = vector.broadcast %cst_42 : f32 to vector<8x32xf32>
    %46 = arith.maximumf %44, %45 : vector<8x32xf32>
    %c0_43 = arith.constant 0 : index
    %c0_44 = arith.constant 0 : index
    %47 = vector.load %arg17[%c0_43, %c0_44] : memref<32x64xf32, #tpu.memory_space<vmem>>, vector<32x64xf32>
    %cst_45 = arith.constant dense<0.000000e+00> : vector<8x64xf32>
    %48 = tpu.matmul %46, %47, %cst_45 {dimension_numbers = #tpu.dot_dimension_numbers<[1], [0], [0], [1], [0, 0, 1, 1], [], []>} : vector<8x32xf32>, vector<32x64xf32>, vector<8x64xf32> -> vector<8x64xf32>
    %c0_46 = arith.constant 0 : index
    %c0_47 = arith.constant 0 : index
    %49 = vector.load %arg18[%c0_46, %c0_47] : memref<1x64xf32, #tpu.memory_space<vmem>>, vector<1x64xf32>
    %50 = vector.broadcast %49 : vector<1x64xf32> to vector<8x64xf32>
    %51 = arith.addf %48, %50 : vector<8x64xf32>
    %cst_48 = arith.constant 0.000000e+00 : f32
    %52 = vector.broadcast %cst_48 : f32 to vector<8x64xf32>
    %53 = arith.maximumf %51, %52 : vector<8x64xf32>
    %c0_49 = arith.constant 0 : index
    %c0_50 = arith.constant 0 : index
    %54 = vector.load %arg19[%c0_49, %c0_50] : memref<64x16xf32, #tpu.memory_space<vmem>>, vector<64x16xf32>
    %cst_51 = arith.constant dense<0.000000e+00> : vector<8x16xf32>
    %55 = tpu.matmul %53, %54, %cst_51 {dimension_numbers = #tpu.dot_dimension_numbers<[1], [0], [0], [1], [0, 0, 1, 1], [], []>} : vector<8x64xf32>, vector<64x16xf32>, vector<8x16xf32> -> vector<8x16xf32>
    %c0_52 = arith.constant 0 : index
    %c0_53 = arith.constant 0 : index
    %56 = vector.load %arg20[%c0_52, %c0_53] : memref<1x16xf32, #tpu.memory_space<vmem>>, vector<1x16xf32>
    %57 = vector.broadcast %56 : vector<1x16xf32> to vector<8x16xf32>
    %58 = arith.addf %55, %57 : vector<8x16xf32>
    %c0_54 = arith.constant 0 : index
    %c0_55 = arith.constant 0 : index
    %59 = vector.load %arg21[%c0_54, %c0_55] : memref<8x16xf32, #tpu.memory_space<vmem>>, vector<8x16xf32>
    tpu.vector_store %arg21[%c0_54, %c0_55], %58 {strides = array<i32>} : memref<8x16xf32, #tpu.memory_space<vmem>>, vector<8x16xf32>,
    return
  }
  func.func @transform_0(%arg0: i32) -> (i32, i32) {
    %c0_i32 = arith.constant 0 : i32
    %c0_i32_0 = arith.constant 0 : i32
    return %arg0, %c0_i32 : i32, i32
  }
  func.func @transform_1(%arg0: i32) -> (i32, i32) {
    %c0_i32 = arith.constant 0 : i32
    %c0_i32_0 = arith.constant 0 : i32
    return %arg0, %c0_i32 : i32, i32
  }
  func.func @transform_2(%arg0: i32) -> (i32, i32) {
    %c0_i32 = arith.constant 0 : i32
    %c0_i32_0 = arith.constant 0 : i32
    %c0_i32_1 = arith.constant 0 : i32
    return %c0_i32, %c0_i32_0 : i32, i32
  }
  func.func @transform_3(%arg0: i32) -> (i32, i32) {
    %c0_i32 = arith.constant 0 : i32
    %c0_i32_0 = arith.constant 0 : i32
    %c0_i32_1 = arith.constant 0 : i32
    return %c0_i32, %c0_i32_0 : i32, i32
  }
  func.func @transform_4(%arg0: i32) -> (i32, i32) {
    %c0_i32 = arith.constant 0 : i32
    %c0_i32_0 = arith.constant 0 : i32
    %c0_i32_1 = arith.constant 0 : i32
    return %c0_i32, %c0_i32_0 : i32, i32
  }
  func.func @transform_5(%arg0: i32) -> (i32, i32) {
    %c0_i32 = arith.constant 0 : i32
    %c0_i32_0 = arith.constant 0 : i32
    %c0_i32_1 = arith.constant 0 : i32
    return %c0_i32, %c0_i32_0 : i32, i32
  }
  func.func @transform_6(%arg0: i32) -> (i32, i32) {
    %c0_i32 = arith.constant 0 : i32
    %c0_i32_0 = arith.constant 0 : i32
    %c0_i32_1 = arith.constant 0 : i32
    return %c0_i32, %c0_i32_0 : i32, i32
  }
  func.func @transform_7(%arg0: i32) -> (i32, i32) {
    %c0_i32 = arith.constant 0 : i32
    %c0_i32_0 = arith.constant 0 : i32
    %c0_i32_1 = arith.constant 0 : i32
    return %c0_i32, %c0_i32_0 : i32, i32
  }
  func.func @transform_8(%arg0: i32) -> (i32, i32) {
    %c0_i32 = arith.constant 0 : i32
    %c0_i32_0 = arith.constant 0 : i32
    %c0_i32_1 = arith.constant 0 : i32
    return %c0_i32, %c0_i32_0 : i32, i32
  }
  func.func @transform_9(%arg0: i32) -> (i32, i32) {
    %c0_i32 = arith.constant 0 : i32
    %c0_i32_0 = arith.constant 0 : i32
    %c0_i32_1 = arith.constant 0 : i32
    return %c0_i32, %c0_i32_0 : i32, i32
  }
  func.func @transform_10(%arg0: i32) -> (i32, i32) {
    %c0_i32 = arith.constant 0 : i32
    %c0_i32_0 = arith.constant 0 : i32
    %c0_i32_1 = arith.constant 0 : i32
    return %c0_i32, %c0_i32_0 : i32, i32
  }
  func.func @transform_11(%arg0: i32) -> (i32, i32) {
    %c0_i32 = arith.constant 0 : i32
    %c0_i32_0 = arith.constant 0 : i32
    %c0_i32_1 = arith.constant 0 : i32
    return %c0_i32, %c0_i32_0 : i32, i32
  }
  func.func @transform_12(%arg0: i32) -> (i32, i32) {
    %c0_i32 = arith.constant 0 : i32
    %c0_i32_0 = arith.constant 0 : i32
    %c0_i32_1 = arith.constant 0 : i32
    return %c0_i32, %c0_i32_0 : i32, i32
  }
  func.func @transform_13(%arg0: i32) -> (i32, i32) {
    %c0_i32 = arith.constant 0 : i32
    %c0_i32_0 = arith.constant 0 : i32
    %c0_i32_1 = arith.constant 0 : i32
    return %c0_i32, %c0_i32_0 : i32, i32
  }
  func.func @transform_14(%arg0: i32) -> (i32, i32) {
    %c0_i32 = arith.constant 0 : i32
    %c0_i32_0 = arith.constant 0 : i32
    %c0_i32_1 = arith.constant 0 : i32
    return %c0_i32, %c0_i32_0 : i32, i32
  }
  func.func @transform_15(%arg0: i32) -> (i32, i32) {
    %c0_i32 = arith.constant 0 : i32
    %c0_i32_0 = arith.constant 0 : i32
    %c0_i32_1 = arith.constant 0 : i32
    return %c0_i32, %c0_i32_0 : i32, i32
  }
  func.func @transform_16(%arg0: i32) -> (i32, i32) {
    %c0_i32 = arith.constant 0 : i32
    %c0_i32_0 = arith.constant 0 : i32
    %c0_i32_1 = arith.constant 0 : i32
    return %c0_i32, %c0_i32_0 : i32, i32
  }
  func.func @transform_17(%arg0: i32) -> (i32, i32) {
    %c0_i32 = arith.constant 0 : i32
    %c0_i32_0 = arith.constant 0 : i32
    %c0_i32_1 = arith.constant 0 : i32
    return %c0_i32, %c0_i32_0 : i32, i32
  }
  func.func @transform_18(%arg0: i32) -> (i32, i32) {
    %c0_i32 = arith.constant 0 : i32
    %c0_i32_0 = arith.constant 0 : i32
    %c0_i32_1 = arith.constant 0 : i32
    return %c0_i32, %c0_i32_0 : i32, i32
  }
  func.func @transform_19(%arg0: i32) -> (i32, i32) {
    %c0_i32 = arith.constant 0 : i32
    %c0_i32_0 = arith.constant 0 : i32
    %c0_i32_1 = arith.constant 0 : i32
    return %c0_i32, %c0_i32_0 : i32, i32
  }
  func.func @transform_20(%arg0: i32) -> (i32, i32) {
    %c0_i32 = arith.constant 0 : i32
    %c0_i32_0 = arith.constant 0 : i32
    return %arg0, %c0_i32 : i32, i32
  }
}

</mosaic_0001>

<llo_original>
// kernel: tpu_custom_call.1
$region0: #{tpu_custom_call.1}
  #allocation0 [shape = 'u32[]', space=smem, size = 0x4, offset = 0x4, fixed_abs, tag = 'smem constant byte address 0x4 - core index']
  #allocation1 [shape = 'u32[72,128]{1,0:T(1,128)}', space=vmem, size = 0x9000, scoped, tag = 'internal scratch']
  %s0 = inlined_call_operand.vmem [shape: f32[16,16], index: 0, kind: input, shape index: {}]
  %s1 = inlined_call_operand.vmem [shape: f32[16,4], index: 1, kind: input, shape index: {}]
  %s2 = inlined_call_operand.vmem [shape: f32[16,32], index: 2, kind: input, shape index: {}]
  %s3 = inlined_call_operand.vmem [shape: f32[4,32], index: 3, kind: input, shape index: {}]
  %s4 = inlined_call_operand.vmem [shape: f32[1,32], index: 4, kind: input, shape index: {}]
  %s5 = inlined_call_operand.vmem [shape: f32[32,64], index: 5, kind: input, shape index: {}]
  %s6 = inlined_call_operand.vmem [shape: f32[4,64], index: 6, kind: input, shape index: {}]
  %s7 = inlined_call_operand.vmem [shape: f32[1,64], index: 7, kind: input, shape index: {}]
  %s8 = inlined_call_operand.vmem [shape: f32[64,32], index: 8, kind: input, shape index: {}]
  %s9 = inlined_call_operand.vmem [shape: f32[4,32], index: 9, kind: input, shape index: {}]
  %s10 = inlined_call_operand.vmem [shape: f32[1,32], index: 10, kind: input, shape index: {}]
  %s11 = inlined_call_operand.vmem [shape: f32[32,8], index: 11, kind: input, shape index: {}]
  %s12 = inlined_call_operand.vmem [shape: f32[4,8], index: 12, kind: input, shape index: {}]
  %s13 = inlined_call_operand.vmem [shape: f32[1,8], index: 13, kind: input, shape index: {}]
  %s14 = inlined_call_operand.vmem [shape: f32[8,32], index: 14, kind: input, shape index: {}]
  %s15 = inlined_call_operand.vmem [shape: f32[1,32], index: 15, kind: input, shape index: {}]
  %s16 = inlined_call_operand.vmem [shape: f32[32,64], index: 16, kind: input, shape index: {}]
  %s17 = inlined_call_operand.vmem [shape: f32[1,64], index: 17, kind: input, shape index: {}]
  %s18 = inlined_call_operand.vmem [shape: f32[64,16], index: 18, kind: input, shape index: {}]
  %s19 = inlined_call_operand.vmem [shape: f32[1,16], index: 19, kind: input, shape index: {}]
  %s20 = inlined_call_operand.hbm [shape: f32[16,16], index: 20, kind: output, shape index: {}]
  %s21 = sld [smem:[#allocation0]]
  $region113: #{tpu_custom_call.1} parent=0
    _
  %s23 = ssub.s32 1, %s21
  %s24 = scalar_select 0, %s23, %s21
  $region1: #{tpu_custom_call.1} parent=0
    #allocation2 [shape = 'u8[8192]{0}', space=vmem, size = 0x2000, scoped, tag = 'output window, operand 0']
    #allocation3 [shape = 's32[2]{0}', space=sflag, size = 0x8, scoped, tag = 'scoped memory for tpu_custom_call.1']
    %25 = vsyncpa [#allocation3], 0
    %s26 = scalar_lea.sflag [#allocation3], 1
    %27 = vsyncpa %s26, 0
    loop: start=0, step=1, limit=4
    $region2: #{tpu_custom_call.1} parent=1 // loop_pre_header
      _
    $region3: #{tpu_custom_call.1} parent=1 // loop_header
      %s29 = sphi 0, %s33
      %p30 = scmp.ge.s32.totalorder %s29, 4
      %s39 = sphi 0, %s41
      %s42 = sphi 0, %s39
      %s43 = sphi 0, %s42
      %s59 = sphi 0, %s43
      %s65 = sphi 0, %s67
      %s68 = sphi 0, %s65
      %s69 = sphi 0, %s68
      %s85 = sphi 0, %s69
      %s89 = sphi 0, %s89
      %s91 = sphi 0, %s89
      %s92 = sphi 0, %s91
      %s106 = sphi 0, %s92
      %s110 = sphi 0, %s110
      %s112 = sphi 0, %s110
      %s113 = sphi 0, %s112
      %s127 = sphi 0, %s113
      %s131 = sphi 0, %s131
      %s133 = sphi 0, %s131
      %s134 = sphi 0, %s133
      %s148 = sphi 0, %s134
      %s152 = sphi 0, %s152
      %s154 = sphi 0, %s152
      %s155 = sphi 0, %s154
      %s169 = sphi 0, %s155
      %s173 = sphi 0, %s173
      %s175 = sphi 0, %s173
      %s176 = sphi 0, %s175
      %s190 = sphi 0, %s176
      %s194 = sphi 0, %s194
      %s196 = sphi 0, %s194
      %s197 = sphi 0, %s196
      %s211 = sphi 0, %s197
      %s215 = sphi 0, %s215
      %s217 = sphi 0, %s215
      %s218 = sphi 0, %s217
      %s232 = sphi 0, %s218
      %s236 = sphi 0, %s236
      %s238 = sphi 0, %s236
      %s239 = sphi 0, %s238
      %s253 = sphi 0, %s239
      %s257 = sphi 0, %s257
      %s259 = sphi 0, %s257
      %s260 = sphi 0, %s259
      %s274 = sphi 0, %s260
      %s278 = sphi 0, %s278
      %s280 = sphi 0, %s278
      %s281 = sphi 0, %s280
      %s295 = sphi 0, %s281
      %s299 = sphi 0, %s299
      %s301 = sphi 0, %s299
      %s302 = sphi 0, %s301
      %s316 = sphi 0, %s302
      %s320 = sphi 0, %s320
      %s322 = sphi 0, %s320
      %s323 = sphi 0, %s322
      %s337 = sphi 0, %s323
      %s341 = sphi 0, %s341
      %s343 = sphi 0, %s341
      %s344 = sphi 0, %s343
      %s358 = sphi 0, %s344
      %s362 = sphi 0, %s362
      %s364 = sphi 0, %s362
      %s365 = sphi 0, %s364
      %s379 = sphi 0, %s365
      %s383 = sphi 0, %s383
      %s385 = sphi 0, %s383
      %s386 = sphi 0, %s385
      %s400 = sphi 0, %s386
      %s404 = sphi 0, %s404
      %s406 = sphi 0, %s404
      %s407 = sphi 0, %s406
      %s421 = sphi 0, %s407
      %s425 = sphi 0, %s425
      %s427 = sphi 0, %s425
      %s428 = sphi 0, %s427
      %s442 = sphi 0, %s428
      %s446 = sphi 0, %s446
      %s448 = sphi 0, %s446
      %s449 = sphi 0, %s448
      %s463 = sphi 0, %s449
      %s469 = sphi 0, %s471
      %s472 = sphi 0, %s469
      %s473 = sphi 0, %s472
      %s489 = sphi 0, %s473
    $region4: #{tpu_custom_call.1} parent=1 // loop_header_branch
      %32 = sbr.rel (%p30) target = $region8
    $region5: #{tpu_custom_call.1} parent=1 // loop_body
      %s34 = ssub.s32 %s29, 1
      %s35 = ssub.s32 %s29, 2
      %s36 = sadd.s32 %s29, 1
      %s37 = ssub.s32 %s29, %s36
      %p38 = scmp.eq.s32.totalorder %s37, 0
      %s40 = sadd.s32 %s39, 1
      %s41 = scalar_select %p38, %s39, %s40
      %p44 = pneg %p38
      %p45 = scmp.eq.s32.totalorder %s29, 1
      %p46 = por %p44, %p45
      %p47 = scmp.ne.s32.totalorder %s39, %s42
      %p48 = scmp.eq.s32.totalorder %s29, 0
      %p49 = por %p47, %p48
      %p50 = scmp.ne.s32.totalorder %s39, %s42
      %p51 = scmp.eq.s32.totalorder %s34, 1
      %p52 = por %p50, %p51
      %p53 = scmp.ne.s32.totalorder %s42, %s43
      %p54 = scmp.eq.s32.totalorder %s34, 0
      %p55 = por %p53, %p54
      %p56 = scmp.ne.s32.totalorder %s42, %s43
      %p57 = scmp.eq.s32.totalorder %s35, 1
      %p58 = por %p56, %p57
      %p60 = scmp.ne.s32.totalorder %s43, %s59
      %p61 = scmp.eq.s32.totalorder %s35, 0
      %p62 = por %p60, %p61
      %s63 = ssub.s32 %s29, %s36
      %p64 = scmp.eq.s32.totalorder %s63, 0
      %s66 = sadd.s32 %s65, 1
      %s67 = scalar_select %p64, %s65, %s66
      %p70 = pneg %p64
      %p71 = scmp.eq.s32.totalorder %s29, 1
      %p72 = por %p70, %p71
      %p73 = scmp.ne.s32.totalorder %s65, %s68
      %p74 = scmp.eq.s32.totalorder %s29, 0
      %p75 = por %p73, %p74
      %p76 = scmp.ne.s32.totalorder %s65, %s68
      %p77 = scmp.eq.s32.totalorder %s34, 1
      %p78 = por %p76, %p77
      %p79 = scmp.ne.s32.totalorder %s68, %s69
      %p80 = scmp.eq.s32.totalorder %s34, 0
      %p81 = por %p79, %p80
      %p82 = scmp.ne.s32.totalorder %s68, %s69
      %p83 = scmp.eq.s32.totalorder %s35, 1
      %p84 = por %p82, %p83
      %p86 = scmp.ne.s32.totalorder %s69, %s85
      %p87 = scmp.eq.s32.totalorder %s35, 0
      %p88 = por %p86, %p87
      %s90 = sadd.s32 %s89, 1
      %p93 = scmp.eq.s32.totalorder %s29, 1
      %p94 = scmp.ne.s32.totalorder %s89, %s91
      %p95 = scmp.eq.s32.totalorder %s29, 0
      %p96 = por %p94, %p95
      %p97 = scmp.ne.s32.totalorder %s89, %s91
      %p98 = scmp.eq.s32.totalorder %s34, 1
      %p99 = por %p97, %p98
      %p100 = scmp.ne.s32.totalorder %s91, %s92
      %p101 = scmp.eq.s32.totalorder %s34, 0
      %p102 = por %p100, %p101
      %p103 = scmp.ne.s32.totalorder %s91, %s92
      %p104 = scmp.eq.s32.totalorder %s35, 1
      %p105 = por %p103, %p104
      %p107 = scmp.ne.s32.totalorder %s92, %s106
      %p108 = scmp.eq.s32.totalorder %s35, 0
      %p109 = por %p107, %p108
      %s111 = sadd.s32 %s110, 1
      %p114 = scmp.eq.s32.totalorder %s29, 1
      %p115 = scmp.ne.s32.totalorder %s110, %s112
      %p116 = scmp.eq.s32.totalorder %s29, 0
      %p117 = por %p115, %p116
      %p118 = scmp.ne.s32.totalorder %s110, %s112
      %p119 = scmp.eq.s32.totalorder %s34, 1
      %p120 = por %p118, %p119
      %p121 = scmp.ne.s32.totalorder %s112, %s113
      %p122 = scmp.eq.s32.totalorder %s34, 0
      %p123 = por %p121, %p122
      %p124 = scmp.ne.s32.totalorder %s112, %s113
      %p125 = scmp.eq.s32.totalorder %s35, 1
      %p126 = por %p124, %p125
      %p128 = scmp.ne.s32.totalorder %s113, %s127
      %p129 = scmp.eq.s32.totalorder %s35, 0
      %p130 = por %p128, %p129
      %s132 = sadd.s32 %s131, 1
      %p135 = scmp.eq.s32.totalorder %s29, 1
      %p136 = scmp.ne.s32.totalorder %s131, %s133
      %p137 = scmp.eq.s32.totalorder %s29, 0
      %p138 = por %p136, %p137
      %p139 = scmp.ne.s32.totalorder %s131, %s133
      %p140 = scmp.eq.s32.totalorder %s34, 1
      %p141 = por %p139, %p140
      %p142 = scmp.ne.s32.totalorder %s133, %s134
      %p143 = scmp.eq.s32.totalorder %s34, 0
      %p144 = por %p142, %p143
      %p145 = scmp.ne.s32.totalorder %s133, %s134
      %p146 = scmp.eq.s32.totalorder %s35, 1
      %p147 = por %p145, %p146
      %p149 = scmp.ne.s32.totalorder %s134, %s148
      %p150 = scmp.eq.s32.totalorder %s35, 0
      %p151 = por %p149, %p150
      %s153 = sadd.s32 %s152, 1
      %p156 = scmp.eq.s32.totalorder %s29, 1
      %p157 = scmp.ne.s32.totalorder %s152, %s154
      %p158 = scmp.eq.s32.totalorder %s29, 0
      %p159 = por %p157, %p158
      %p160 = scmp.ne.s32.totalorder %s152, %s154
      %p161 = scmp.eq.s32.totalorder %s34, 1
      %p162 = por %p160, %p161
      %p163 = scmp.ne.s32.totalorder %s154, %s155
      %p164 = scmp.eq.s32.totalorder %s34, 0
      %p165 = por %p163, %p164
      %p166 = scmp.ne.s32.totalorder %s154, %s155
      %p167 = scmp.eq.s32.totalorder %s35, 1
      %p168 = por %p166, %p167
      %p170 = scmp.ne.s32.totalorder %s155, %s169
      %p171 = scmp.eq.s32.totalorder %s35, 0
      %p172 = por %p170, %p171
      %s174 = sadd.s32 %s173, 1
      %p177 = scmp.eq.s32.totalorder %s29, 1
      %p178 = scmp.ne.s32.totalorder %s173, %s175
      %p179 = scmp.eq.s32.totalorder %s29, 0
      %p180 = por %p178, %p179
      %p181 = scmp.ne.s32.totalorder %s173, %s175
      %p182 = scmp.eq.s32.totalorder %s34, 1
      %p183 = por %p181, %p182
      %p184 = scmp.ne.s32.totalorder %s175, %s176
      %p185 = scmp.eq.s32.totalorder %s34, 0
      %p186 = por %p184, %p185
      %p187 = scmp.ne.s32.totalorder %s175, %s176
      %p188 = scmp.eq.s32.totalorder %s35, 1
      %p189 = por %p187, %p188
      %p191 = scmp.ne.s32.totalorder %s176, %s190
      %p192 = scmp.eq.s32.totalorder %s35, 0
      %p193 = por %p191, %p192
      %s195 = sadd.s32 %s194, 1
      %p198 = scmp.eq.s32.totalorder %s29, 1
      %p199 = scmp.ne.s32.totalorder %s194, %s196
      %p200 = scmp.eq.s32.totalorder %s29, 0
      %p201 = por %p199, %p200
      %p202 = scmp.ne.s32.totalorder %s194, %s196
      %p203 = scmp.eq.s32.totalorder %s34, 1
      %p204 = por %p202, %p203
      %p205 = scmp.ne.s32.totalorder %s196, %s197
      %p206 = scmp.eq.s32.totalorder %s34, 0
      %p207 = por %p205, %p206
      %p208 = scmp.ne.s32.totalorder %s196, %s197
      %p209 = scmp.eq.s32.totalorder %s35, 1
      %p210 = por %p208, %p209
      %p212 = scmp.ne.s32.totalorder %s197, %s211
      %p213 = scmp.eq.s32.totalorder %s35, 0
      %p214 = por %p212, %p213
      %s216 = sadd.s32 %s215, 1
      %p219 = scmp.eq.s32.totalorder %s29, 1
      %p220 = scmp.ne.s32.totalorder %s215, %s217
      %p221 = scmp.eq.s32.totalorder %s29, 0
      %p222 = por %p220, %p221
      %p223 = scmp.ne.s32.totalorder %s215, %s217
      %p224 = scmp.eq.s32.totalorder %s34, 1
      %p225 = por %p223, %p224
      %p226 = scmp.ne.s32.totalorder %s217, %s218
      %p227 = scmp.eq.s32.totalorder %s34, 0
      %p228 = por %p226, %p227
      %p229 = scmp.ne.s32.totalorder %s217, %s218
      %p230 = scmp.eq.s32.totalorder %s35, 1
      %p231 = por %p229, %p230
      %p233 = scmp.ne.s32.totalorder %s218, %s232
      %p234 = scmp.eq.s32.totalorder %s35, 0
      %p235 = por %p233, %p234
      %s237 = sadd.s32 %s236, 1
      %p240 = scmp.eq.s32.totalorder %s29, 1
      %p241 = scmp.ne.s32.totalorder %s236, %s238
      %p242 = scmp.eq.s32.totalorder %s29, 0
      %p243 = por %p241, %p242
      %p244 = scmp.ne.s32.totalorder %s236, %s238
      %p245 = scmp.eq.s32.totalorder %s34, 1
      %p246 = por %p244, %p245
      %p247 = scmp.ne.s32.totalorder %s238, %s239
      %p248 = scmp.eq.s32.totalorder %s34, 0
      %p249 = por %p247, %p248
      %p250 = scmp.ne.s32.totalorder %s238, %s239
      %p251 = scmp.eq.s32.totalorder %s35, 1
      %p252 = por %p250, %p251
      %p254 = scmp.ne.s32.totalorder %s239, %s253
      %p255 = scmp.eq.s32.totalorder %s35, 0
      %p256 = por %p254, %p255
      %s258 = sadd.s32 %s257, 1
      %p261 = scmp.eq.s32.totalorder %s29, 1
      %p262 = scmp.ne.s32.totalorder %s257, %s259
      %p263 = scmp.eq.s32.totalorder %s29, 0
      %p264 = por %p262, %p263
      %p265 = scmp.ne.s32.totalorder %s257, %s259
      %p266 = scmp.eq.s32.totalorder %s34, 1
      %p267 = por %p265, %p266
      %p268 = scmp.ne.s32.totalorder %s259, %s260
      %p269 = scmp.eq.s32.totalorder %s34, 0
      %p270 = por %p268, %p269
      %p271 = scmp.ne.s32.totalorder %s259, %s260
      %p272 = scmp.eq.s32.totalorder %s35, 1
      %p273 = por %p271, %p272
      %p275 = scmp.ne.s32.totalorder %s260, %s274
      %p276 = scmp.eq.s32.totalorder %s35, 0
      %p277 = por %p275, %p276
      %s279 = sadd.s32 %s278, 1
      %p282 = scmp.eq.s32.totalorder %s29, 1
      %p283 = scmp.ne.s32.totalorder %s278, %s280
      %p284 = scmp.eq.s32.totalorder %s29, 0
      %p285 = por %p283, %p284
      %p286 = scmp.ne.s32.totalorder %s278, %s280
      %p287 = scmp.eq.s32.totalorder %s34, 1
      %p288 = por %p286, %p287
      %p289 = scmp.ne.s32.totalorder %s280, %s281
      %p290 = scmp.eq.s32.totalorder %s34, 0
      %p291 = por %p289, %p290
      %p292 = scmp.ne.s32.totalorder %s280, %s281
      %p293 = scmp.eq.s32.totalorder %s35, 1
      %p294 = por %p292, %p293
      %p296 = scmp.ne.s32.totalorder %s281, %s295
      %p297 = scmp.eq.s32.totalorder %s35, 0
      %p298 = por %p296, %p297
      %s300 = sadd.s32 %s299, 1
      %p303 = scmp.eq.s32.totalorder %s29, 1
      %p304 = scmp.ne.s32.totalorder %s299, %s301
      %p305 = scmp.eq.s32.totalorder %s29, 0
      %p306 = por %p304, %p305
      %p307 = scmp.ne.s32.totalorder %s299, %s301
      %p308 = scmp.eq.s32.totalorder %s34, 1
      %p309 = por %p307, %p308
      %p310 = scmp.ne.s32.totalorder %s301, %s302
      %p311 = scmp.eq.s32.totalorder %s34, 0
      %p312 = por %p310, %p311
      %p313 = scmp.ne.s32.totalorder %s301, %s302
      %p314 = scmp.eq.s32.totalorder %s35, 1
      %p315 = por %p313, %p314
      %p317 = scmp.ne.s32.totalorder %s302, %s316
      %p318 = scmp.eq.s32.totalorder %s35, 0
      %p319 = por %p317, %p318
      %s321 = sadd.s32 %s320, 1
      %p324 = scmp.eq.s32.totalorder %s29, 1
      %p325 = scmp.ne.s32.totalorder %s320, %s322
      %p326 = scmp.eq.s32.totalorder %s29, 0
      %p327 = por %p325, %p326
      %p328 = scmp.ne.s32.totalorder %s320, %s322
      %p329 = scmp.eq.s32.totalorder %s34, 1
      %p330 = por %p328, %p329
      %p331 = scmp.ne.s32.totalorder %s322, %s323
      %p332 = scmp.eq.s32.totalorder %s34, 0
      %p333 = por %p331, %p332
      %p334 = scmp.ne.s32.totalorder %s322, %s323
      %p335 = scmp.eq.s32.totalorder %s35, 1
      %p336 = por %p334, %p335
      %p338 = scmp.ne.s32.totalorder %s323, %s337
      %p339 = scmp.eq.s32.totalorder %s35, 0
      %p340 = por %p338, %p339
      %s342 = sadd.s32 %s341, 1
      %p345 = scmp.eq.s32.totalorder %s29, 1
      %p346 = scmp.ne.s32.totalorder %s341, %s343
      %p347 = scmp.eq.s32.totalorder %s29, 0
      %p348 = por %p346, %p347
      %p349 = scmp.ne.s32.totalorder %s341, %s343
      %p350 = scmp.eq.s32.totalorder %s34, 1
      %p351 = por %p349, %p350
      %p352 = scmp.ne.s32.totalorder %s343, %s344
      %p353 = scmp.eq.s32.totalorder %s34, 0
      %p354 = por %p352, %p353
      %p355 = scmp.ne.s32.totalorder %s343, %s344
      %p356 = scmp.eq.s32.totalorder %s35, 1
      %p357 = por %p355, %p356
      %p359 = scmp.ne.s32.totalorder %s344, %s358
      %p360 = scmp.eq.s32.totalorder %s35, 0
      %p361 = por %p359, %p360
      %s363 = sadd.s32 %s362, 1
      %p366 = scmp.eq.s32.totalorder %s29, 1
      %p367 = scmp.ne.s32.totalorder %s362, %s364
      %p368 = scmp.eq.s32.totalorder %s29, 0
      %p369 = por %p367, %p368
      %p370 = scmp.ne.s32.totalorder %s362, %s364
      %p371 = scmp.eq.s32.totalorder %s34, 1
      %p372 = por %p370, %p371
      %p373 = scmp.ne.s32.totalorder %s364, %s365
      %p374 = scmp.eq.s32.totalorder %s34, 0
      %p375 = por %p373, %p374
      %p376 = scmp.ne.s32.totalorder %s364, %s365
      %p377 = scmp.eq.s32.totalorder %s35, 1
      %p378 = por %p376, %p377
      %p380 = scmp.ne.s32.totalorder %s365, %s379
      %p381 = scmp.eq.s32.totalorder %s35, 0
      %p382 = por %p380, %p381
      %s384 = sadd.s32 %s383, 1
      %p387 = scmp.eq.s32.totalorder %s29, 1
      %p388 = scmp.ne.s32.totalorder %s383, %s385
      %p389 = scmp.eq.s32.totalorder %s29, 0
      %p390 = por %p388, %p389
      %p391 = scmp.ne.s32.totalorder %s383, %s385
      %p392 = scmp.eq.s32.totalorder %s34, 1
      %p393 = por %p391, %p392
      %p394 = scmp.ne.s32.totalorder %s385, %s386
      %p395 = scmp.eq.s32.totalorder %s34, 0
      %p396 = por %p394, %p395
      %p397 = scmp.ne.s32.totalorder %s385, %s386
      %p398 = scmp.eq.s32.totalorder %s35, 1
      %p399 = por %p397, %p398
      %p401 = scmp.ne.s32.totalorder %s386, %s400
      %p402 = scmp.eq.s32.totalorder %s35, 0
      %p403 = por %p401, %p402
      %s405 = sadd.s32 %s404, 1
      %p408 = scmp.eq.s32.totalorder %s29, 1
      %p409 = scmp.ne.s32.totalorder %s404, %s406
      %p410 = scmp.eq.s32.totalorder %s29, 0
      %p411 = por %p409, %p410
      %p412 = scmp.ne.s32.totalorder %s404, %s406
      %p413 = scmp.eq.s32.totalorder %s34, 1
      %p414 = por %p412, %p413
      %p415 = scmp.ne.s32.totalorder %s406, %s407
      %p416 = scmp.eq.s32.totalorder %s34, 0
      %p417 = por %p415, %p416
      %p418 = scmp.ne.s32.totalorder %s406, %s407
      %p419 = scmp.eq.s32.totalorder %s35, 1
      %p420 = por %p418, %p419
      %p422 = scmp.ne.s32.totalorder %s407, %s421
      %p423 = scmp.eq.s32.totalorder %s35, 0
      %p424 = por %p422, %p423
      %s426 = sadd.s32 %s425, 1
      %p429 = scmp.eq.s32.totalorder %s29, 1
      %p430 = scmp.ne.s32.totalorder %s425, %s427
      %p431 = scmp.eq.s32.totalorder %s29, 0
      %p432 = por %p430, %p431
      %p433 = scmp.ne.s32.totalorder %s425, %s427
      %p434 = scmp.eq.s32.totalorder %s34, 1
      %p435 = por %p433, %p434
      %p436 = scmp.ne.s32.totalorder %s427, %s428
      %p437 = scmp.eq.s32.totalorder %s34, 0
      %p438 = por %p436, %p437
      %p439 = scmp.ne.s32.totalorder %s427, %s428
      %p440 = scmp.eq.s32.totalorder %s35, 1
      %p441 = por %p439, %p440
      %p443 = scmp.ne.s32.totalorder %s428, %s442
      %p444 = scmp.eq.s32.totalorder %s35, 0
      %p445 = por %p443, %p444
      %s447 = sadd.s32 %s446, 1
      %p450 = scmp.eq.s32.totalorder %s29, 1
      %p451 = scmp.ne.s32.totalorder %s446, %s448
      %p452 = scmp.eq.s32.totalorder %s29, 0
      %p453 = por %p451, %p452
      %p454 = scmp.ne.s32.totalorder %s446, %s448
      %p455 = scmp.eq.s32.totalorder %s34, 1
      %p456 = por %p454, %p455
      %p457 = scmp.ne.s32.totalorder %s448, %s449
      %p458 = scmp.eq.s32.totalorder %s34, 0
      %p459 = por %p457, %p458
      %p460 = scmp.ne.s32.totalorder %s448, %s449
      %p461 = scmp.eq.s32.totalorder %s35, 1
      %p462 = por %p460, %p461
      %p464 = scmp.ne.s32.totalorder %s449, %s463
      %p465 = scmp.eq.s32.totalorder %s35, 0
      %p466 = por %p464, %p465
      %s467 = ssub.s32 %s29, %s36
      %p468 = scmp.eq.s32.totalorder %s467, 0
      %s470 = sadd.s32 %s469, 1
      %s471 = scalar_select %p468, %s469, %s470
      %p474 = pneg %p468
      %p475 = scmp.eq.s32.totalorder %s29, 1
      %p476 = por %p474, %p475
      %p477 = scmp.ne.s32.totalorder %s469, %s472
      %p478 = scmp.eq.s32.totalorder %s29, 0
      %p479 = por %p477, %p478
      %p480 = scmp.ne.s32.totalorder %s469, %s472
      %p481 = scmp.eq.s32.totalorder %s34, 1
      %p482 = por %p480, %p481
      %p483 = scmp.ne.s32.totalorder %s472, %s473
      %p484 = scmp.eq.s32.totalorder %s34, 0
      %p485 = por %p483, %p484
      %p486 = scmp.ne.s32.totalorder %s472, %s473
      %p487 = scmp.eq.s32.totalorder %s35, 1
      %p488 = por %p486, %p487
      %p490 = scmp.ne.s32.totalorder %s473, %s489
      %p491 = scmp.eq.s32.totalorder %s35, 0
      %p492 = por %p490, %p491
      %p493 = scmp.le.s32.totalorder 1, %s29
      %p494 = scmp.lt.s32.totalorder %s29, 3
      %p495 = pnand %p493, %p494
      %p496 = pneg %p495
      // Predicated region
      $region9: #{tpu_custom_call.1} parent=5 // pred_check
        _
      $region10: #{tpu_custom_call.1} parent=5 // pred_check_branch
        %498 = sbr.rel (%p495) target = $region12
      $region11: #{tpu_custom_call.1} parent=5 // pred_region
        %s499 = ssub.s32 %s29, 1
        // Predicated region
        $region13: #{tpu_custom_call.1} parent=11 // pred_check
          %p500 = pneg %p102
        $region14: #{tpu_custom_call.1} parent=11 // pred_check_branch
          %502 = sbr.rel (%p500) target = $region16
        $region15: #{tpu_custom_call.1} parent=11 // pred_region
          _
        $region16: #{tpu_custom_call.1} parent=11 // pred_fallthru
          _
        // Predicated region
        $region17: #{tpu_custom_call.1} parent=11 // pred_check
          %p503 = pneg %p123
        $region18: #{tpu_custom_call.1} parent=11 // pred_check_branch
          %505 = sbr.rel (%p503) target = $region20
        $region19: #{tpu_custom_call.1} parent=11 // pred_region
          _
        $region20: #{tpu_custom_call.1} parent=11 // pred_fallthru
          _
        // Predicated region
        $region21: #{tpu_custom_call.1} parent=11 // pred_check
          %p506 = pneg %p144
        $region22: #{tpu_custom_call.1} parent=11 // pred_check_branch
          %508 = sbr.rel (%p506) target = $region24
        $region23: #{tpu_custom_call.1} parent=11 // pred_region
          _
        $region24: #{tpu_custom_call.1} parent=11 // pred_fallthru
          _
        // Predicated region
        $region25: #{tpu_custom_call.1} parent=11 // pred_check
          %p509 = pneg %p165
        $region26: #{tpu_custom_call.1} parent=11 // pred_check_branch
          %511 = sbr.rel (%p509) target = $region28
        $region27: #{tpu_custom_call.1} parent=11 // pred_region
          _
        $region28: #{tpu_custom_call.1} parent=11 // pred_fallthru
          _
        // Predicated region
        $region29: #{tpu_custom_call.1} parent=11 // pred_check
          %p512 = pneg %p186
        $region30: #{tpu_custom_call.1} parent=11 // pred_check_branch
          %514 = sbr.rel (%p512) target = $region32
        $region31: #{tpu_custom_call.1} parent=11 // pred_region
          _
        $region32: #{tpu_custom_call.1} parent=11 // pred_fallthru
          _
        // Predicated region
        $region33: #{tpu_custom_call.1} parent=11 // pred_check
          %p515 = pneg %p207
        $region34: #{tpu_custom_call.1} parent=11 // pred_check_branch
          %517 = sbr.rel (%p515) target = $region36
        $region35: #{tpu_custom_call.1} parent=11 // pred_region
          _
        $region36: #{tpu_custom_call.1} parent=11 // pred_fallthru
          _
        // Predicated region
        $region37: #{tpu_custom_call.1} parent=11 // pred_check
          %p518 = pneg %p228
        $region38: #{tpu_custom_call.1} parent=11 // pred_check_branch
          %520 = sbr.rel (%p518) target = $region40
        $region39: #{tpu_custom_call.1} parent=11 // pred_region
          _
        $region40: #{tpu_custom_call.1} parent=11 // pred_fallthru
          _
        // Predicated region
        $region41: #{tpu_custom_call.1} parent=11 // pred_check
          %p521 = pneg %p249
        $region42: #{tpu_custom_call.1} parent=11 // pred_check_branch
          %523 = sbr.rel (%p521) target = $region44
        $region43: #{tpu_custom_call.1} parent=11 // pred_region
          _
        $region44: #{tpu_custom_call.1} parent=11 // pred_fallthru
          _
        // Predicated region
        $region45: #{tpu_custom_call.1} parent=11 // pred_check
          %p524 = pneg %p270
        $region46: #{tpu_custom_call.1} parent=11 // pred_check_branch
          %526 = sbr.rel (%p524) target = $region48
        $region47: #{tpu_custom_call.1} parent=11 // pred_region
          _
        $region48: #{tpu_custom_call.1} parent=11 // pred_fallthru
          _
        // Predicated region
        $region49: #{tpu_custom_call.1} parent=11 // pred_check
          %p527 = pneg %p291
        $region50: #{tpu_custom_call.1} parent=11 // pred_check_branch
          %529 = sbr.rel (%p527) target = $region52
        $region51: #{tpu_custom_call.1} parent=11 // pred_region
          _
        $region52: #{tpu_custom_call.1} parent=11 // pred_fallthru
          _
        // Predicated region
        $region53: #{tpu_custom_call.1} parent=11 // pred_check
          %p530 = pneg %p312
        $region54: #{tpu_custom_call.1} parent=11 // pred_check_branch
          %532 = sbr.rel (%p530) target = $region56
        $region55: #{tpu_custom_call.1} parent=11 // pred_region
          _
        $region56: #{tpu_custom_call.1} parent=11 // pred_fallthru
          _
        // Predicated region
        $region57: #{tpu_custom_call.1} parent=11 // pred_check
          %p533 = pneg %p333
        $region58: #{tpu_custom_call.1} parent=11 // pred_check_branch
          %535 = sbr.rel (%p533) target = $region60
        $region59: #{tpu_custom_call.1} parent=11 // pred_region
          _
        $region60: #{tpu_custom_call.1} parent=11 // pred_fallthru
          _
        // Predicated region
        $region61: #{tpu_custom_call.1} parent=11 // pred_check
          %p536 = pneg %p354
        $region62: #{tpu_custom_call.1} parent=11 // pred_check_branch
          %538 = sbr.rel (%p536) target = $region64
        $region63: #{tpu_custom_call.1} parent=11 // pred_region
          _
        $region64: #{tpu_custom_call.1} parent=11 // pred_fallthru
          _
        // Predicated region
        $region65: #{tpu_custom_call.1} parent=11 // pred_check
          %p539 = pneg %p375
        $region66: #{tpu_custom_call.1} parent=11 // pred_check_branch
          %541 = sbr.rel (%p539) target = $region68
        $region67: #{tpu_custom_call.1} parent=11 // pred_region
          _
        $region68: #{tpu_custom_call.1} parent=11 // pred_fallthru
          _
        // Predicated region
        $region69: #{tpu_custom_call.1} parent=11 // pred_check
          %p542 = pneg %p396
        $region70: #{tpu_custom_call.1} parent=11 // pred_check_branch
          %544 = sbr.rel (%p542) target = $region72
        $region71: #{tpu_custom_call.1} parent=11 // pred_region
          _
        $region72: #{tpu_custom_call.1} parent=11 // pred_fallthru
          _
        // Predicated region
        $region73: #{tpu_custom_call.1} parent=11 // pred_check
          %p545 = pneg %p417
        $region74: #{tpu_custom_call.1} parent=11 // pred_check_branch
          %547 = sbr.rel (%p545) target = $region76
        $region75: #{tpu_custom_call.1} parent=11 // pred_region
          _
        $region76: #{tpu_custom_call.1} parent=11 // pred_fallthru
          _
        // Predicated region
        $region77: #{tpu_custom_call.1} parent=11 // pred_check
          %p548 = pneg %p438
        $region78: #{tpu_custom_call.1} parent=11 // pred_check_branch
          %550 = sbr.rel (%p548) target = $region80
        $region79: #{tpu_custom_call.1} parent=11 // pred_region
          _
        $region80: #{tpu_custom_call.1} parent=11 // pred_fallthru
          _
        // Predicated region
        $region81: #{tpu_custom_call.1} parent=11 // pred_check
          %p551 = pneg %p459
        $region82: #{tpu_custom_call.1} parent=11 // pred_check_branch
          %553 = sbr.rel (%p551) target = $region84
        $region83: #{tpu_custom_call.1} parent=11 // pred_region
          _
        $region84: #{tpu_custom_call.1} parent=11 // pred_fallthru
          _
      $region12: #{tpu_custom_call.1} parent=5 // pred_fallthru
        _
      %p554 = scmp.lt.s32.totalorder %s29, 2
      // Predicated region
      $region85: #{tpu_custom_call.1} parent=5 // pred_check
        %p555 = pneg %p554
      $region86: #{tpu_custom_call.1} parent=5 // pred_check_branch
        %557 = sbr.rel (%p555) target = $region88
      $region87: #{tpu_custom_call.1} parent=5 // pred_region
        // Predicated region
        $region89: #{tpu_custom_call.1} parent=87 // pred_check
          %p558 = pneg %p49
        $region90: #{tpu_custom_call.1} parent=87 // pred_check_branch
          %560 = sbr.rel (%p558) target = $region92
        $region91: #{tpu_custom_call.1} parent=87 // pred_region
          %p561 = scmp.lt.s32.totalorder %s29, 1
          %s562 = scalar_select %p561, %s29, 1
          %s563 = smul.addr %s562, 8
          %s564 = scalar_lea.vmem %s0, %s563
        $region92: #{tpu_custom_call.1} parent=87 // pred_fallthru
          _
        // Predicated region
        $region93: #{tpu_custom_call.1} parent=87 // pred_check
          %p565 = pneg %p75
        $region94: #{tpu_custom_call.1} parent=87 // pred_check_branch
          %567 = sbr.rel (%p565) target = $region96
        $region95: #{tpu_custom_call.1} parent=87 // pred_region
          %p568 = scmp.lt.s32.totalorder %s29, 1
          %s569 = scalar_select %p568, %s29, 1
          %s570 = smul.addr %s569, 8
          %s571 = scalar_lea.vmem %s1, %s570
        $region96: #{tpu_custom_call.1} parent=87 // pred_fallthru
          _
      $region88: #{tpu_custom_call.1} parent=5 // pred_fallthru
        _
      %p572 = scmp.le.s32.totalorder 1, %s29
      %p573 = scmp.lt.s32.totalorder %s29, 3
      %p574 = pnand %p572, %p573
      %p575 = pneg %p574
      // Predicated region
      $region97: #{tpu_custom_call.1} parent=5 // pred_check
        _
      $region98: #{tpu_custom_call.1} parent=5 // pred_check_branch
        %577 = sbr.rel (%p574) target = $region100
      $region99: #{tpu_custom_call.1} parent=5 // pred_region
        %s578 = ssub.s32 %s29, 1
        %p579 = scmp.lt.s32.totalorder %s34, 1
        %s580 = scalar_select %p579, %s34, 1
        %s581 = smul.addr %s580, 8
        %s582 = scalar_lea.vmem %s0, %s581
        %p583 = pneg %p55
        %p584 = pneg %p52
        %p585 = scmp.lt.s32.totalorder %s34, 1
        %s586 = scalar_select %p585, %s34, 1
        %s587 = smul.addr %s586, 8
        %s588 = scalar_lea.vmem %s1, %s587
        %p589 = pneg %p81
        %p590 = pneg %p78
        %p591 = pneg %p102
        %p592 = pneg %p99
        %p593 = pneg %p123
        %p594 = pneg %p120
        %p595 = pneg %p144
        %p596 = pneg %p141
        %p597 = pneg %p165
        %p598 = pneg %p162
        %p599 = pneg %p186
        %p600 = pneg %p183
        %p601 = pneg %p207
        %p602 = pneg %p204
        %p603 = pneg %p228
        %p604 = pneg %p225
        %p605 = pneg %p249
        %p606 = pneg %p246
        %p607 = pneg %p270
        %p608 = pneg %p267
        %p609 = pneg %p291
        %p610 = pneg %p288
        %p611 = pneg %p312
        %p612 = pneg %p309
        %p613 = pneg %p333
        %p614 = pneg %p330
        %p615 = pneg %p354
        %p616 = pneg %p351
        %p617 = pneg %p375
        %p618 = pneg %p372
        %p619 = pneg %p396
        %p620 = pneg %p393
        %p621 = pneg %p417
        %p622 = pneg %p414
        %p623 = pneg %p438
        %p624 = pneg %p435
        %p625 = pneg %p459
        %p626 = pneg %p456
        %p627 = pneg %p485
        %p628 = pneg %p482
        %s629 = sand.u32 %s472, 1
        %s630 = scalar_lea.sflag [#allocation3], %s629
        %s631 = sand.u32 %s472, 1
        %s632 = smul.addr %s631, 8
        %s633 = scalar_lea.vmem [#allocation2], %s632
        %p634 = scmp.lt.s32.totalorder %s34, 1
        %s635 = scalar_select %p634, %s34, 1
        %s636 = smul.addr %s635, 8
        %s637 = scalar_lea.vmem %s0, %s636
        %p638 = scmp.lt.s32.totalorder %s34, 1
        %s639 = scalar_select %p638, %s34, 1
        %s640 = smul.addr %s639, 8
        %s641 = scalar_lea.vmem %s1, %s640
        %v642 = vld [vmem:[%s637] sm:$0xff]
        %v643 = vld [vmem:[%s641] sm:$0xff]
        %v644 = vld [vmem:[%s2] sm:$0xff]
        %v645 = vld [vmem:[%s2 + $0x8] sm:$0xff]
        %v646 = vld [vmem:[%s3] sm:$0xf]
        %vm647 = vcmask 31744
        %v649 = vsel %vm647, %v643, 0
        %vm651 = vcmask 1043456
        %v653 = vsel %vm651, %v646, 0
        %655 = vmatpush.msra.mxu0 0.0
        %656 = vmatpush.msra.mxu0 0.0
        %657 = vmatpush.msra.mxu0 0.0
        %658 = vmatpush.msra.mxu0 0.0
        %659 = vmatpush.msra.mxu0 0.0
        %660 = vmatpush.msra.mxu0 0.0
        %661 = vmatpush.msra.mxu0 0.0
        %662 = vmatpush.msra.mxu0 0.0
        %663 = vmatpush.msra.mxu0 0.0
        %664 = vmatpush.msra.mxu0 0.0
        %665 = vmatpush.msra.mxu0 0.0
        %666 = vmatpush.msra.mxu0 0.0
        %667 = vmatpush.msra.mxu0 0.0
        %668 = vmatpush.msra.mxu0 0.0
        %669 = vmatpush.msra.mxu0 0.0
        %670 = vmatpush.msra.mxu0 %v653
        %671 = vmatmul.f32.gmra.mxu0 %v649
        %v672 = vpop.f32.mrf.mxu0
        %v673 = vadd.f32 0.0, %v672
        %674 = vdwg.mxu0
        %vm675 = vcmask 130048
        %v677 = vsel %vm675, %v642, 0
        %679 = vmatpush.msra.mxu0 0.0
        %680 = vmatpush.msra.mxu0 0.0
        %681 = vmatpush.msra.mxu0 0.0
        %682 = vmatpush.msra.mxu0 0.0
        %683 = vmatpush.msra.mxu0 0.0
        %684 = vmatpush.msra.mxu0 0.0
        %685 = vmatpush.msra.mxu0 0.0
        %686 = vmatpush.msra.mxu0 0.0
        %687 = vmatpush.msra.mxu0 0.0
        %688 = vmatpush.msra.mxu0 0.0
        %689 = vmatpush.msra.mxu0 0.0
        %690 = vmatpush.msra.mxu0 0.0
        %691 = vmatpush.msra.mxu0 0.0
        %692 = vmatpush.msra.mxu0 0.0
        %693 = vmatpush.msra.mxu0 %v645
        %694 = vmatpush.msra.mxu0 %v644
        %695 = vmatmul.f32.gmra.mxu0 %v677
        %v696 = vpop.f32.mrf.mxu0
        %v697 = vadd.f32 %v673, %v696
        %698 = vdwg.mxu0
        %v699 = vld [vmem:[%s4] sm:$0x1]
        %v701 = vperm.slane %v699, 0
        %v703 = vadd.f32 %v697, %v701
        %v704 = vld [vmem:[%s5] sm:$0xff]
        %v705 = vld [vmem:[%s5 + $0x8] sm:$0xff]
        %v706 = vld [vmem:[%s5 + $0x10] sm:$0xff]
        %v707 = vld [vmem:[%s5 + $0x18] sm:$0xff]
        %v708 = vld [vmem:[%s6] sm:$0xf]
        %v710 = vsel %vm651, %v708, 0
        %712 = vmatpush.msra.mxu0 0.0
        %713 = vmatpush.msra.mxu0 0.0
        %714 = vmatpush.msra.mxu0 0.0
        %715 = vmatpush.msra.mxu0 0.0
        %716 = vmatpush.msra.mxu0 0.0
        %717 = vmatpush.msra.mxu0 0.0
        %718 = vmatpush.msra.mxu0 0.0
        %719 = vmatpush.msra.mxu0 0.0
        %720 = vmatpush.msra.mxu0 0.0
        %721 = vmatpush.msra.mxu0 0.0
        %722 = vmatpush.msra.mxu0 0.0
        %723 = vmatpush.msra.mxu0 0.0
        %724 = vmatpush.msra.mxu0 0.0
        %725 = vmatpush.msra.mxu0 0.0
        %726 = vmatpush.msra.mxu0 0.0
        %727 = vmatpush.msra.mxu0 %v710
        %728 = vmatmul.f32.gmra.mxu0 %v649
        %v729 = vpop.f32.mrf.mxu0
        %v730 = vadd.f32 0.0, %v729
        %731 = vdwg.mxu0
        %vm732 = vcmask 261120
        %v734 = vsel %vm732, %v703, 0
        %736 = vmatpush.msra.mxu0 0.0
        %737 = vmatpush.msra.mxu0 0.0
        %738 = vmatpush.msra.mxu0 0.0
        %739 = vmatpush.msra.mxu0 0.0
        %740 = vmatpush.msra.mxu0 0.0
        %741 = vmatpush.msra.mxu0 0.0
        %742 = vmatpush.msra.mxu0 0.0
        %743 = vmatpush.msra.mxu0 0.0
        %744 = vmatpush.msra.mxu0 0.0
        %745 = vmatpush.msra.mxu0 0.0
        %746 = vmatpush.msra.mxu0 0.0
        %747 = vmatpush.msra.mxu0 0.0
        %748 = vmatpush.msra.mxu0 %v707
        %749 = vmatpush.msra.mxu0 %v706
        %750 = vmatpush.msra.mxu0 %v705
        %751 = vmatpush.msra.mxu0 %v704
        %752 = vmatmul.f32.gmra.mxu0 %v734
        %v753 = vpop.f32.mrf.mxu0
        %v754 = vadd.f32 %v730, %v753
        %755 = vdwg.mxu0
        %v756 = vld [vmem:[%s7] sm:$0x1]
        %v758 = vperm.slane %v756, 0
        %v760 = vadd.f32 %v754, %v758
        %v761 = vmax.f32 %v760, 0.0
        %v762 = vld [vmem:[%s8] sm:$0xff]
        %v763 = vld [vmem:[%s8 + $0x8] sm:$0xff]
        %v764 = vld [vmem:[%s8 + $0x10] sm:$0xff]
        %v765 = vld [vmem:[%s8 + $0x18] sm:$0xff]
        %v766 = vld [vmem:[%s8 + $0x20] sm:$0xff]
        %v767 = vld [vmem:[%s8 + $0x28] sm:$0xff]
        %v768 = vld [vmem:[%s8 + $0x30] sm:$0xff]
        %v769 = vld [vmem:[%s8 + $0x38] sm:$0xff]
        %v770 = vld [vmem:[%s9] sm:$0xf]
        %v772 = vsel %vm651, %v770, 0
        %774 = vmatpush.msra.mxu0 0.0
        %775 = vmatpush.msra.mxu0 0.0
        %776 = vmatpush.msra.mxu0 0.0
        %777 = vmatpush.msra.mxu0 0.0
        %778 = vmatpush.msra.mxu0 0.0
        %779 = vmatpush.msra.mxu0 0.0
        %780 = vmatpush.msra.mxu0 0.0
        %781 = vmatpush.msra.mxu0 0.0
        %782 = vmatpush.msra.mxu0 0.0
        %783 = vmatpush.msra.mxu0 0.0
        %784 = vmatpush.msra.mxu0 0.0
        %785 = vmatpush.msra.mxu0 0.0
        %786 = vmatpush.msra.mxu0 0.0
        %787 = vmatpush.msra.mxu0 0.0
        %788 = vmatpush.msra.mxu0 0.0
        %789 = vmatpush.msra.mxu0 %v772
        %790 = vmatmul.f32.gmra.mxu0 %v649
        %v791 = vpop.f32.mrf.mxu0
        %v792 = vadd.f32 0.0, %v791
        %793 = vdwg.mxu0
        %vm794 = vcmask 523264
        %v796 = vsel %vm794, %v761, 0
        %798 = vmatpush.msra.mxu0 0.0
        %799 = vmatpush.msra.mxu0 0.0
        %800 = vmatpush.msra.mxu0 0.0
        %801 = vmatpush.msra.mxu0 0.0
        %802 = vmatpush.msra.mxu0 0.0
        %803 = vmatpush.msra.mxu0 0.0
        %804 = vmatpush.msra.mxu0 0.0
        %805 = vmatpush.msra.mxu0 0.0
        %806 = vmatpush.msra.mxu0 %v769
        %807 = vmatpush.msra.mxu0 %v768
        %808 = vmatpush.msra.mxu0 %v767
        %809 = vmatpush.msra.mxu0 %v766
        %810 = vmatpush.msra.mxu0 %v765
        %811 = vmatpush.msra.mxu0 %v764
        %812 = vmatpush.msra.mxu0 %v763
        %813 = vmatpush.msra.mxu0 %v762
        %814 = vmatmul.f32.gmra.mxu0 %v796
        %v815 = vpop.f32.mrf.mxu0
        %v816 = vadd.f32 %v792, %v815
        %817 = vdwg.mxu0
        %v818 = vld [vmem:[%s10] sm:$0x1]
        %v820 = vperm.slane %v818, 0
        %v822 = vadd.f32 %v816, %v820
        %v823 = vmax.f32 %v822, 0.0
        %v824 = vld [vmem:[%s11] sm:$0xff]
        %v825 = vld [vmem:[%s11 + $0x8] sm:$0xff]
        %v826 = vld [vmem:[%s11 + $0x10] sm:$0xff]
        %v827 = vld [vmem:[%s11 + $0x18] sm:$0xff]
        %v828 = vld [vmem:[%s12] sm:$0xf]
        %v830 = vsel %vm651, %v828, 0
        %832 = vmatpush.msra.mxu0 0.0
        %833 = vmatpush.msra.mxu0 0.0
        %834 = vmatpush.msra.mxu0 0.0
        %835 = vmatpush.msra.mxu0 0.0
        %836 = vmatpush.msra.mxu0 0.0
        %837 = vmatpush.msra.mxu0 0.0
        %838 = vmatpush.msra.mxu0 0.0
        %839 = vmatpush.msra.mxu0 0.0
        %840 = vmatpush.msra.mxu0 0.0
        %841 = vmatpush.msra.mxu0 0.0
        %842 = vmatpush.msra.mxu0 0.0
        %843 = vmatpush.msra.mxu0 0.0
        %844 = vmatpush.msra.mxu0 0.0
        %845 = vmatpush.msra.mxu0 0.0
        %846 = vmatpush.msra.mxu0 0.0
        %847 = vmatpush.msra.mxu0 %v830
        %848 = vmatmul.f32.gmra.mxu0 %v649
        %v849 = vpop.f32.mrf.mxu0
        %v850 = vadd.f32 0.0, %v849
        %851 = vdwg.mxu0
        %v853 = vsel %vm732, %v823, 0
        %855 = vmatpush.msra.mxu0 0.0
        %856 = vmatpush.msra.mxu0 0.0
        %857 = vmatpush.msra.mxu0 0.0
        %858 = vmatpush.msra.mxu0 0.0
        %859 = vmatpush.msra.mxu0 0.0
        %860 = vmatpush.msra.mxu0 0.0
        %861 = vmatpush.msra.mxu0 0.0
        %862 = vmatpush.msra.mxu0 0.0
        %863 = vmatpush.msra.mxu0 0.0
        %864 = vmatpush.msra.mxu0 0.0
        %865 = vmatpush.msra.mxu0 0.0
        %866 = vmatpush.msra.mxu0 0.0
        %867 = vmatpush.msra.mxu0 %v827
        %868 = vmatpush.msra.mxu0 %v826
        %869 = vmatpush.msra.mxu0 %v825
        %870 = vmatpush.msra.mxu0 %v824
        %871 = vmatmul.f32.gmra.mxu0 %v853
        %v872 = vpop.f32.mrf.mxu0
        %v873 = vadd.f32 %v850, %v872
        %874 = vdwg.mxu0
        %v875 = vld [vmem:[%s13] sm:$0x1]
        %v877 = vperm.slane %v875, 0
        %v879 = vadd.f32 %v873, %v877
        %v880 = vmax.f32 %v879, 0.0
        %v881 = vld [vmem:[%s14] sm:$0xff]
        %v882 = vld [vmem:[%s15] sm:$0x1]
        %v884 = vperm.slane %v882, 0
        %vm886 = vcmask 64512
        %v888 = vsel %vm886, %v880, 0
        %890 = vmatpush.msra.mxu0 0.0
        %891 = vmatpush.msra.mxu0 0.0
        %892 = vmatpush.msra.mxu0 0.0
        %893 = vmatpush.msra.mxu0 0.0
        %894 = vmatpush.msra.mxu0 0.0
        %895 = vmatpush.msra.mxu0 0.0
        %896 = vmatpush.msra.mxu0 0.0
        %897 = vmatpush.msra.mxu0 0.0
        %898 = vmatpush.msra.mxu0 0.0
        %899 = vmatpush.msra.mxu0 0.0
        %900 = vmatpush.msra.mxu0 0.0
        %901 = vmatpush.msra.mxu0 0.0
        %902 = vmatpush.msra.mxu0 0.0
        %903 = vmatpush.msra.mxu0 0.0
        %904 = vmatpush.msra.mxu0 0.0
        %905 = vmatpush.msra.mxu0 %v881
        %906 = vmatmul.f32.gmra.mxu0 %v888
        %v907 = vpop.f32.mrf.mxu0
        %v908 = vadd.f32 %v884, %v907
        %909 = vdwg.mxu0
        %v910 = vmax.f32 %v908, 0.0
        %v911 = vld [vmem:[%s16] sm:$0xff]
        %v912 = vld [vmem:[%s16 + $0x8] sm:$0xff]
        %v913 = vld [vmem:[%s16 + $0x10] sm:$0xff]
        %v914 = vld [vmem:[%s16 + $0x18] sm:$0xff]
        %v915 = vld [vmem:[%s17] sm:$0x1]
        %v917 = vperm.slane %v915, 0
        %v920 = vsel %vm732, %v910, 0
        %922 = vmatpush.msra.mxu0 0.0
        %923 = vmatpush.msra.mxu0 0.0
        %924 = vmatpush.msra.mxu0 0.0
        %925 = vmatpush.msra.mxu0 0.0
        %926 = vmatpush.msra.mxu0 0.0
        %927 = vmatpush.msra.mxu0 0.0
        %928 = vmatpush.msra.mxu0 0.0
        %929 = vmatpush.msra.mxu0 0.0
        %930 = vmatpush.msra.mxu0 0.0
        %931 = vmatpush.msra.mxu0 0.0
        %932 = vmatpush.msra.mxu0 0.0
        %933 = vmatpush.msra.mxu0 0.0
        %934 = vmatpush.msra.mxu0 %v914
        %935 = vmatpush.msra.mxu0 %v913
        %936 = vmatpush.msra.mxu0 %v912
        %937 = vmatpush.msra.mxu0 %v911
        %938 = vmatmul.f32.gmra.mxu0 %v920
        %v939 = vpop.f32.mrf.mxu0
        %v940 = vadd.f32 %v917, %v939
        %941 = vdwg.mxu0
        %v942 = vmax.f32 %v940, 0.0
        %v943 = vld [vmem:[%s18] sm:$0xff]
        %v944 = vld [vmem:[%s18 + $0x8] sm:$0xff]
        %v945 = vld [vmem:[%s18 + $0x10] sm:$0xff]
        %v946 = vld [vmem:[%s18 + $0x18] sm:$0xff]
        %v947 = vld [vmem:[%s18 + $0x20] sm:$0xff]
        %v948 = vld [vmem:[%s18 + $0x28] sm:$0xff]
        %v949 = vld [vmem:[%s18 + $0x30] sm:$0xff]
        %v950 = vld [vmem:[%s18 + $0x38] sm:$0xff]
        %v951 = vld [vmem:[%s19] sm:$0x1]
        %v953 = vperm.slane %v951, 0
        %v956 = vsel %vm794, %v942, 0
        %958 = vmatpush.msra.mxu0 0.0
        %959 = vmatpush.msra.mxu0 0.0
        %960 = vmatpush.msra.mxu0 0.0
        %961 = vmatpush.msra.mxu0 0.0
        %962 = vmatpush.msra.mxu0 0.0
        %963 = vmatpush.msra.mxu0 0.0
        %964 = vmatpush.msra.mxu0 0.0
        %965 = vmatpush.msra.mxu0 0.0
        %966 = vmatpush.msra.mxu0 %v950
        %967 = vmatpush.msra.mxu0 %v949
        %968 = vmatpush.msra.mxu0 %v948
        %969 = vmatpush.msra.mxu0 %v947
        %970 = vmatpush.msra.mxu0 %v946
        %971 = vmatpush.msra.mxu0 %v945
        %972 = vmatpush.msra.mxu0 %v944
        %973 = vmatpush.msra.mxu0 %v943
        %974 = vmatmul.f32.gmra.mxu0 %v956
        %v975 = vpop.f32.mrf.mxu0
        %v976 = vadd.f32 %v953, %v975
        %977 = vdwg.mxu0
        %978 = vst.msk [vmem:[%s633] sm:$0xff] %vm675, %v976
        %s979 = sand.u32 %s472, 1
        %s980 = scalar_lea.sflag [#allocation3], %s979
        %s981 = sand.u32 %s472, 1
        %s982 = smul.addr %s981, 8
        %s983 = scalar_lea.vmem [#allocation2], %s982
        // Predicated region
        $region101: #{tpu_custom_call.1} parent=99 // pred_check
          %p984 = pneg %p482
        $region102: #{tpu_custom_call.1} parent=99 // pred_check_branch
          %986 = sbr.rel (%p984) target = $region104
        $region103: #{tpu_custom_call.1} parent=99 // pred_region
          %988 = vsyncadd %s980, 0
          %s989 = smul.addr %s34, 8
          %s990 = scalar_lea.hbm %s20, %s989
          %s992 = sshll.u32 %s983, 4
          %s993 = int_to_ptr.vmem [resolvable:$true] %s992
          %s994 = sshll.u32 %s990, 4
          %s995 = int_to_ptr.hbm [resolvable:$true] %s994
          %997 = dma.vmem_to_hbm [thread:$0]  %s993, 128, %s995, %s980
        $region104: #{tpu_custom_call.1} parent=99 // pred_fallthru
          _
      $region100: #{tpu_custom_call.1} parent=5 // pred_fallthru
        _
      %p998 = scmp.le.s32.totalorder 2, %s29
      // Predicated region
      $region105: #{tpu_custom_call.1} parent=5 // pred_check
        %p999 = pneg %p998
      $region106: #{tpu_custom_call.1} parent=5 // pred_check_branch
        %1001 = sbr.rel (%p999) target = $region108
      $region107: #{tpu_custom_call.1} parent=5 // pred_region
        %s1002 = ssub.s32 %s29, 2
        // Predicated region
        $region109: #{tpu_custom_call.1} parent=107 // pred_check
          %p1003 = pneg %p488
        $region110: #{tpu_custom_call.1} parent=107 // pred_check_branch
          %1005 = sbr.rel (%p1003) target = $region112
        $region111: #{tpu_custom_call.1} parent=107 // pred_region
          %s1006 = sand.u32 %s473, 1
          %s1007 = scalar_lea.sflag [#allocation3], %s1006
          %s1008 = sand.u32 %s473, 1
          %s1009 = smul.addr %s1008, 8
          %s1010 = scalar_lea.vmem [#allocation2], %s1009
          %1012 = dma.done %s1007, 128
        $region112: #{tpu_custom_call.1} parent=107 // pred_fallthru
          _
      $region108: #{tpu_custom_call.1} parent=5 // pred_fallthru
        _
    $region6: #{tpu_custom_call.1} parent=1 // loop_footer
      %s33 = sadd.s32 1, %s29
    $region7: #{tpu_custom_call.1} parent=1 // loop_footer_branch
      %28 = sbr.rel target = $region3
    $region8: #{tpu_custom_call.1} parent=1 // loop_exit
      _
    %1013 = vsyncpa [#allocation3], 1
    %s1014 = scalar_lea.sflag [#allocation3], 1
    %1015 = vsyncpa %s1014, 1

</llo_original>
